<compile_context>
chip_gen: v6e
topology: v6e:2x2x1
jax: 0.10.0
libtpu: 0.0.40
codegen_flags: <defaults>
</compile_context>

<pallas_src>
import functools

import jax
import jax.numpy as jnp
from jax.experimental import pallas as pl
from jax.experimental.pallas import tpu as pltpu

_LANE = 128      # lane width (last dim)
_SUBLANE = 8     # sublane width (second-to-last dim)
_NEG_INF = -1e30


def _round_up(x, m):
    return ((x + m - 1) // m) * m


def _resident_spec(shape):
    """Weights / biases: constant index_map -> resident in VMEM across batch tiles.
    Buffered(1): they are never re-fetched, so double-buffering only doubles the
    footprint (critical for v7x's 64 MiB/TC VMEM)."""
    index_map = lambda i: tuple(0 for _ in shape)
    try:
        return pl.BlockSpec(shape, index_map, pipeline_mode=pl.Buffered(1))
    except TypeError:  # older jax without pipeline_mode= / Buffered
        return pl.BlockSpec(shape, index_map)


def _fused_mlp_kernel(x_ref, *refs):
    """Fused MLP: (linear -> ELU)* -> linear -> softmax, all operands in VMEM.

    refs = (w0, b0, w1, b1, ..., w_{L-1}, b_{L-1}, out_ref); feature axes are
    pre-padded to multiples of 128. Hidden-layer pad lanes stay exactly 0 through
    ELU (zero pad weights/biases); last-layer pad lanes carry bias = -1e30 so they
    vanish in the softmax with no in-kernel masking.
    """
    out_ref = refs[-1]
    wb_refs = refs[:-1]
    n_layers = len(wb_refs) // 2

    h = x_ref[...].astype(jnp.float32)
    for i in range(n_layers):
        w = wb_refs[2 * i][...]             # bf16 -> feed the MXU directly (no f32 upcast)
        b = wb_refs[2 * i + 1][...]         # f32 (1, Dout_pad), broadcasts over rows
        y = jnp.dot(h.astype(w.dtype), w, preferred_element_type=jnp.float32) + b

        if i < n_layers - 1:
            # nn.ELU(alpha=1.0): y if y > 0 else exp(y) - 1. Clamp the discarded
            # branch so it never overflows (keeps any future VJP NaN-free).
            h = jnp.where(y > 0, y, jnp.exp(jnp.minimum(y, 0.0)) - 1.0)
        else:
            # nn.Softmax(dim=1): padded logit lanes are already -1e30 from the bias.
            m = jnp.max(y, axis=-1, keepdims=True)
            e = jnp.exp(y - m)
            denom = jnp.sum(e, axis=-1, keepdims=True)
            r = pl.reciprocal(denom, approx=True)   # EUP vrcp (free bundle slot)
            r = r * (2.0 - denom * r)               # one Newton step -> full f32 accuracy
            h = e * r

    out_ref[...] = h.astype(out_ref.dtype)


def mlp_forward_pallas(x, padded_params_flat, *, n_classes, batch_tile=256):
    """x: [B, Din] (unpadded). padded_params_flat: (w0_p, b0_p, w1_p, b1_p, ...),
    each already padded to lane multiples with w_p: [Din_pad, Dout_pad] bf16,
    b_p: [1, Dout_pad] f32 (last layer's pad lanes = -1e30)."""
    B, Din = x.shape
    din_pad = padded_params_flat[0].shape[0]
    assert din_pad == _round_up(Din, _LANE)
    ncls_pad = padded_params_flat[-1].shape[-1]
    n_layers = len(padded_params_flat) // 2

    # Batch tiling: one tile for small batches (no grid loop), big tiles otherwise.
    tb = _round_up(min(B, batch_tile), _SUBLANE)
    b_pad = _round_up(B, tb)

    # Skip the host-side padded copy of x when it is already lane/tile aligned.
    if B == b_pad and Din == din_pad:
        x_p = x
    else:
        x_p = jnp.zeros((b_pad, din_pad), x.dtype).at[:B, :Din].set(x)

    # BlockSpecs: x / out tiled over batch; weights & biases resident, single-buffered.
    in_specs = [pl.BlockSpec((tb, din_pad), lambda i: (i, 0))]
    for p in padded_params_flat:
        in_specs.append(_resident_spec(p.shape))
    out_spec = pl.BlockSpec((tb, ncls_pad), lambda i: (i, 0))

    # Advisory cost estimate for XLA's scheduler around the custom call.
    flops = 0
    transcendentals = 0
    for li in range(n_layers):
        w = padded_params_flat[2 * li]
        flops += 2 * b_pad * int(w.shape[0]) * int(w.shape[1])
        transcendentals += b_pad * int(w.shape[1])
    param_bytes = sum(int(p.size) * p.dtype.itemsize for p in padded_params_flat)
    bytes_accessed = (int(x_p.size) * x_p.dtype.itemsize + param_bytes
                      + b_pad * ncls_pad * x.dtype.itemsize)
    cost = pl.CostEstimate(flops=flops, transcendentals=transcendentals,
                           bytes_accessed=bytes_accessed)

    # VMEM budget: resident params (single-buffered, counted 2x for safety margin)
    # + double-buffered x/out tiles + activation headroom; clamp to v7x's 64 MiB/TC.
    stream_bytes = 2 * tb * (din_pad + ncls_pad) * 4
    act_bytes = 4 * tb * max(int(p.shape[-1]) for p in padded_params_flat) * 4
    vmem_limit = min(64 << 20,
                     max(32 << 20, 2 * param_bytes + stream_bytes + act_bytes + (8 << 20)))

    out_padded = pl.pallas_call(
        _fused_mlp_kernel,
        out_shape=jax.ShapeDtypeStruct((b_pad, ncls_pad), x.dtype),
        grid_spec=pltpu.PrefetchScalarGridSpec(
            num_scalar_prefetch=0,
            grid=(b_pad // tb,),
            in_specs=in_specs,
            out_specs=out_spec,
        ),
        compiler_params=pltpu.CompilerParams(
            # TODO(synk): if an xprof trace on v7x shows only one TensorCore busy,
            # switch this axis to pltpu.CORE_PARALLEL (keep b_pad//tb >= 2 and even).
            dimension_semantics=("parallel",),
            vmem_limit_bytes=int(vmem_limit),
        ),
        cost_estimate=cost,
    )(x_p, *padded_params_flat)

    if b_pad == B and ncls_pad == n_classes:
        return out_padded
    return out_padded[:B, :n_classes]


# ----------------------------------------------------------------------------
# Parameter helpers (match the PyTorch module: weight ~ N(0, 0.0001), bias = 0)
# ----------------------------------------------------------------------------
def init_mlp_params(key, n_inputs, n_hidden, n_classes):
    dims = list(zip([n_inputs] + n_hidden, n_hidden + [n_classes]))
    params = []
    for (din, dout) in dims:
        key, sub = jax.random.split(key)
        # stored transposed relative to PyTorch: [in, out]
        w = jax.random.normal(sub, (din, dout), dtype=jnp.float32) * 1e-4
        b = jnp.zeros((dout,), dtype=jnp.float32)
        params.append((w, b))
    return params


def pad_mlp_params(params):
    """Pad every weight to [Din_pad, Dout_pad] (stored bf16 for the MXU) and every
    bias to (1, Dout_pad) f32 (feature axes rounded up to 128). Zero pad columns
    keep padded hidden lanes exactly 0 through ELU; the LAST layer's padded bias
    lanes are -1e30 so padded logits vanish in the softmax with no in-kernel mask.
    Done once, outside the jit."""
    padded = []
    n_layers = len(params)
    for li, (w, b) in enumerate(params):
        din, dout = w.shape
        din_p, dout_p = _round_up(din, _LANE), _round_up(dout, _LANE)
        w_p = jnp.zeros((din_p, dout_p), jnp.bfloat16).at[:din, :dout].set(
            w.astype(jnp.bfloat16))
        pad_fill = _NEG_INF if li == n_layers - 1 else 0.0
        b_p = jnp.full((1, dout_p), pad_fill, jnp.float32).at[0, :dout].set(
            b.astype(jnp.float32))
        padded += [w_p, b_p]
    return tuple(padded)


def mlp_forward_ref(x, params):
    """Pure-JAX reference matching the kernel numerics (bf16 matmul operands,
    f32 accumulate / elementwise) for the correctness check."""
    out = x.astype(jnp.float32)
    n_layers = len(params)
    for i, (w, b) in enumerate(params):
        out = jnp.dot(out.astype(jnp.bfloat16), w.astype(jnp.bfloat16),
                      preferred_element_type=jnp.float32) + b.astype(jnp.float32)
        if i < n_layers - 1:
            out = jnp.where(out > 0, out, jnp.exp(jnp.minimum(out, 0.0)) - 1.0)
    return jax.nn.softmax(out, axis=1)


if __name__ == "__main__":
    key = jax.random.PRNGKey(0)

    batch = 32
    n_inputs = 32
    n_hidden = [64, 32]
    n_classes = 10

    key, xkey = jax.random.split(key)
    x = jax.random.normal(xkey, (batch, n_inputs), dtype=jnp.float32)

    params = init_mlp_params(key, n_inputs, n_hidden, n_classes)
    padded_flat = pad_mlp_params(params)

    forward = jax.jit(functools.partial(mlp_forward_pallas, n_classes=n_classes))
    out = jax.block_until_ready(forward(x, padded_flat))

    ref = mlp_forward_ref(x, params)
    assert out.shape == (batch, n_classes)
    assert jnp.allclose(jnp.sum(out, axis=1), 1.0, atol=1e-5)
    assert jnp.allclose(out, ref, atol=1e-5, rtol=1e-5)

    print("KERNEL_OK")
</pallas_src>

<mosaic_0001>
module attributes {stable_mosaic.version = 11 : i64} {
  func.func @_fused_mlp_kernel(%arg0: i32, %arg1: memref<32x128xf32, #tpu.memory_space<vmem>>, %arg2: memref<128x128xbf16, #tpu.memory_space<vmem>>, %arg3: memref<1x128xf32, #tpu.memory_space<vmem>>, %arg4: memref<128x128xbf16, #tpu.memory_space<vmem>>, %arg5: memref<1x128xf32, #tpu.memory_space<vmem>>, %arg6: memref<128x128xbf16, #tpu.memory_space<vmem>>, %arg7: memref<1x128xf32, #tpu.memory_space<vmem>>, %arg8: memref<32x128xf32, #tpu.memory_space<vmem>>) attributes {dimension_semantics = [#tpu.dimension_semantics<parallel>], iteration_bounds = array<i64: 1>, scalar_prefetch = 0 : i64, scratch_operands = 0 : i64, tpu.core_type = #tpu.core_type<tc>, window_params = [{transform_indices = @transform_0, window_bounds = array<i64: 32, 128>}, {pipeline_mode = #tpu.pipeline_mode<synchronous>, transform_indices = @transform_1, window_bounds = array<i64: 128, 128>}, {pipeline_mode = #tpu.pipeline_mode<synchronous>, transform_indices = @transform_2, window_bounds = array<i64: 1, 128>}, {pipeline_mode = #tpu.pipeline_mode<synchronous>, transform_indices = @transform_3, window_bounds = array<i64: 128, 128>}, {pipeline_mode = #tpu.pipeline_mode<synchronous>, transform_indices = @transform_4, window_bounds = array<i64: 1, 128>}, {pipeline_mode = #tpu.pipeline_mode<synchronous>, transform_indices = @transform_5, window_bounds = array<i64: 128, 128>}, {pipeline_mode = #tpu.pipeline_mode<synchronous>, transform_indices = @transform_6, window_bounds = array<i64: 1, 128>}, {transform_indices = @transform_7, window_bounds = array<i64: 32, 128>}]} {
    %c0 = arith.constant 0 : index
    %c0_0 = arith.constant 0 : index
    %0 = vector.load %arg1[%c0, %c0_0] : memref<32x128xf32, #tpu.memory_space<vmem>>, vector<32x128xf32>
    %c0_1 = arith.constant 0 : index
    %c0_2 = arith.constant 0 : index
    %1 = vector.load %arg2[%c0_1, %c0_2] : memref<128x128xbf16, #tpu.memory_space<vmem>>, vector<128x128xbf16>
    %c0_3 = arith.constant 0 : index
    %c0_4 = arith.constant 0 : index
    %2 = vector.load %arg3[%c0_3, %c0_4] : memref<1x128xf32, #tpu.memory_space<vmem>>, vector<1x128xf32>
    %3 = arith.truncf %0 : vector<32x128xf32> to vector<32x128xbf16>
    %cst = arith.constant dense<0.000000e+00> : vector<32x128xf32>
    %4 = tpu.matmul %3, %1, %cst {dimension_numbers = #tpu.dot_dimension_numbers<[1], [0], [0], [1], [0, 0, 1, 1], [], []>} : vector<32x128xbf16>, vector<128x128xbf16>, vector<32x128xf32> -> vector<32x128xf32>
    %5 = vector.broadcast %2 : vector<1x128xf32> to vector<32x128xf32>
    %6 = arith.addf %4, %5 : vector<32x128xf32>
    %cst_5 = arith.constant 0.000000e+00 : f32
    %7 = vector.broadcast %cst_5 : f32 to vector<32x128xf32>
    %8 = arith.cmpf ogt, %6, %7 : vector<32x128xf32>
    %cst_6 = arith.constant 0.000000e+00 : f32
    %9 = vector.broadcast %cst_6 : f32 to vector<32x128xf32>
    %10 = arith.minimumf %6, %9 : vector<32x128xf32>
    %11 = math.exp %10 : vector<32x128xf32>
    %cst_7 = arith.constant 1.000000e+00 : f32
    %12 = vector.broadcast %cst_7 : f32 to vector<32x128xf32>
    %13 = arith.subf %11, %12 : vector<32x128xf32>
    %14 = arith.select %8, %6, %13 : vector<32x128xi1>, vector<32x128xf32>
    %c0_8 = arith.constant 0 : index
    %c0_9 = arith.constant 0 : index
    %15 = vector.load %arg4[%c0_8, %c0_9] : memref<128x128xbf16, #tpu.memory_space<vmem>>, vector<128x128xbf16>
    %c0_10 = arith.constant 0 : index
    %c0_11 = arith.constant 0 : index
    %16 = vector.load %arg5[%c0_10, %c0_11] : memref<1x128xf32, #tpu.memory_space<vmem>>, vector<1x128xf32>
    %17 = arith.truncf %14 : vector<32x128xf32> to vector<32x128xbf16>
    %cst_12 = arith.constant dense<0.000000e+00> : vector<32x128xf32>
    %18 = tpu.matmul %17, %15, %cst_12 {dimension_numbers = #tpu.dot_dimension_numbers<[1], [0], [0], [1], [0, 0, 1, 1], [], []>} : vector<32x128xbf16>, vector<128x128xbf16>, vector<32x128xf32> -> vector<32x128xf32>
    %19 = vector.broadcast %16 : vector<1x128xf32> to vector<32x128xf32>
    %20 = arith.addf %18, %19 : vector<32x128xf32>
    %cst_13 = arith.constant 0.000000e+00 : f32
    %21 = vector.broadcast %cst_13 : f32 to vector<32x128xf32>
    %22 = arith.cmpf ogt, %20, %21 : vector<32x128xf32>
    %cst_14 = arith.constant 0.000000e+00 : f32
    %23 = vector.broadcast %cst_14 : f32 to vector<32x128xf32>
    %24 = arith.minimumf %20, %23 : vector<32x128xf32>
    %25 = math.exp %24 : vector<32x128xf32>
    %cst_15 = arith.constant 1.000000e+00 : f32
    %26 = vector.broadcast %cst_15 : f32 to vector<32x128xf32>
    %27 = arith.subf %25, %26 : vector<32x128xf32>
    %28 = arith.select %22, %20, %27 : vector<32x128xi1>, vector<32x128xf32>
    %c0_16 = arith.constant 0 : index
    %c0_17 = arith.constant 0 : index
    %29 = vector.load %arg6[%c0_16, %c0_17] : memref<128x128xbf16, #tpu.memory_space<vmem>>, vector<128x128xbf16>
    %c0_18 = arith.constant 0 : index
    %c0_19 = arith.constant 0 : index
    %30 = vector.load %arg7[%c0_18, %c0_19] : memref<1x128xf32, #tpu.memory_space<vmem>>, vector<1x128xf32>
    %31 = arith.truncf %28 : vector<32x128xf32> to vector<32x128xbf16>
    %cst_20 = arith.constant dense<0.000000e+00> : vector<32x128xf32>
    %32 = tpu.matmul %31, %29, %cst_20 {dimension_numbers = #tpu.dot_dimension_numbers<[1], [0], [0], [1], [0, 0, 1, 1], [], []>} : vector<32x128xbf16>, vector<128x128xbf16>, vector<32x128xf32> -> vector<32x128xf32>
    %33 = vector.broadcast %30 : vector<1x128xf32> to vector<32x128xf32>
    %34 = arith.addf %32, %33 : vector<32x128xf32>
    %cst_21 = arith.constant dense<0xFF800000> : vector<32xf32>
    %35 = vector.multi_reduction <maximumf>, %34, %cst_21 [1] : vector<32x128xf32> to vector<32xf32>
    %36 = vector.shape_cast %35 : vector<32xf32> to vector<32x1xf32>
    %37 = vector.broadcast %36 : vector<32x1xf32> to vector<32x128xf32>
    %38 = arith.subf %34, %37 : vector<32x128xf32>
    %39 = math.exp %38 : vector<32x128xf32>
    %cst_22 = arith.constant dense<0.000000e+00> : vector<32xf32>
    %40 = vector.multi_reduction <add>, %39, %cst_22 [1] : vector<32x128xf32> to vector<32xf32>
    %41 = vector.shape_cast %40 : vector<32xf32> to vector<32x1xf32>
    %42 = tpu.reciprocal %41 {approx = true} : vector<32x1xf32> -> vector<32x1xf32>
    %43 = arith.mulf %41, %42 : vector<32x1xf32>
    %cst_23 = arith.constant 2.000000e+00 : f32
    %44 = vector.broadcast %cst_23 : f32 to vector<32x1xf32>
    %45 = arith.subf %44, %43 : vector<32x1xf32>
    %46 = arith.mulf %42, %45 : vector<32x1xf32>
    %47 = vector.broadcast %46 : vector<32x1xf32> to vector<32x128xf32>
    %48 = arith.mulf %39, %47 : vector<32x128xf32>
    %c0_24 = arith.constant 0 : index
    %c0_25 = arith.constant 0 : index
    %49 = vector.load %arg8[%c0_24, %c0_25] : memref<32x128xf32, #tpu.memory_space<vmem>>, vector<32x128xf32>
    tpu.vector_store %arg8[%c0_24, %c0_25], %48 {strides = array<i32>} : memref<32x128xf32, #tpu.memory_space<vmem>>, vector<32x128xf32>,
    return
  }
  func.func @transform_0(%arg0: i32) -> (i32, i32) {
    %c0_i32 = arith.constant 0 : i32
    %c0_i32_0 = arith.constant 0 : i32
    return %arg0, %c0_i32 : i32, i32
  }
  func.func @transform_1(%arg0: i32) -> (i32, i32) {
    %c0_i32 = arith.constant 0 : i32
    %c0_i32_0 = arith.constant 0 : i32
    %c0_i32_1 = arith.constant 0 : i32
    return %c0_i32, %c0_i32_0 : i32, i32
  }
  func.func @transform_2(%arg0: i32) -> (i32, i32) {
    %c0_i32 = arith.constant 0 : i32
    %c0_i32_0 = arith.constant 0 : i32
    %c0_i32_1 = arith.constant 0 : i32
    return %c0_i32, %c0_i32_0 : i32, i32
  }
  func.func @transform_3(%arg0: i32) -> (i32, i32) {
    %c0_i32 = arith.constant 0 : i32
    %c0_i32_0 = arith.constant 0 : i32
    %c0_i32_1 = arith.constant 0 : i32
    return %c0_i32, %c0_i32_0 : i32, i32
  }
  func.func @transform_4(%arg0: i32) -> (i32, i32) {
    %c0_i32 = arith.constant 0 : i32
    %c0_i32_0 = arith.constant 0 : i32
    %c0_i32_1 = arith.constant 0 : i32
    return %c0_i32, %c0_i32_0 : i32, i32
  }
  func.func @transform_5(%arg0: i32) -> (i32, i32) {
    %c0_i32 = arith.constant 0 : i32
    %c0_i32_0 = arith.constant 0 : i32
    %c0_i32_1 = arith.constant 0 : i32
    return %c0_i32, %c0_i32_0 : i32, i32
  }
  func.func @transform_6(%arg0: i32) -> (i32, i32) {
    %c0_i32 = arith.constant 0 : i32
    %c0_i32_0 = arith.constant 0 : i32
    %c0_i32_1 = arith.constant 0 : i32
    return %c0_i32, %c0_i32_0 : i32, i32
  }
  func.func @transform_7(%arg0: i32) -> (i32, i32) {
    %c0_i32 = arith.constant 0 : i32
    %c0_i32_0 = arith.constant 0 : i32
    return %arg0, %c0_i32 : i32, i32
  }
}

</mosaic_0001>

<llo_original>
// kernel: mlp_forward_pallas.1
$region0: #{mlp_forward_pallas.1}
  #allocation0 [shape = 'u32[]', space=smem, size = 0x4, offset = 0x4, fixed_abs, tag = 'smem constant byte address 0x4 - core index']
  #allocation1 [shape = 'u32[144,128]{1,0:T(1,128)}', space=vmem, size = 0x12000, scoped, tag = 'internal scratch']
  %s0 = inlined_call_operand.vmem [shape: f32[32,128], index: 0, kind: input, shape index: {}]
  %s1 = inlined_call_operand.vmem [shape: bf16[128,128], index: 1, kind: input, shape index: {}]
  %s2 = inlined_call_operand.vmem [shape: f32[1,128], index: 2, kind: input, shape index: {}]
  %s3 = inlined_call_operand.vmem [shape: bf16[128,128], index: 3, kind: input, shape index: {}]
  %s4 = inlined_call_operand.vmem [shape: f32[1,128], index: 4, kind: input, shape index: {}]
  %s5 = inlined_call_operand.hbm [shape: bf16[128,128], index: 5, kind: input, shape index: {}]
  %s6 = inlined_call_operand.vmem [shape: f32[1,128], index: 6, kind: input, shape index: {}]
  %s7 = inlined_call_operand.vmem [shape: f32[32,128], index: 7, kind: output, shape index: {}]
  %s8 = sld [smem:[#allocation0]]
  $region42: #{mlp_forward_pallas.1} parent=0
    _
  %s10 = ssub.s32 1, %s8
  %s11 = scalar_select 0, %s10, %s8
  $region1: #{mlp_forward_pallas.1} parent=0
    #allocation2 [shape = 'u8[32768]{0}', space=vmem, size = 0x8000, scoped, tag = 'input window, operand 5, single buffered']
    #allocation3 [shape = 's32[1]{0}', space=sflag, size = 0x4, scoped, tag = 'scoped memory for mlp_forward_pallas.1']
    %12 = vsyncpa [#allocation3], 0
    // Predicated region
    $region2: #{mlp_forward_pallas.1} parent=1 // pred_check
      _
    $region3: #{mlp_forward_pallas.1} parent=1 // pred_check_branch
      %14 = sbr.rel (0) target = $region5
    $region4: #{mlp_forward_pallas.1} parent=1 // pred_region
      _
    $region5: #{mlp_forward_pallas.1} parent=1 // pred_fallthru
      _
    // Predicated region
    $region6: #{mlp_forward_pallas.1} parent=1 // pred_check
      _
    $region7: #{mlp_forward_pallas.1} parent=1 // pred_check_branch
      %16 = sbr.rel (0) target = $region9
    $region8: #{mlp_forward_pallas.1} parent=1 // pred_region
      _
    $region9: #{mlp_forward_pallas.1} parent=1 // pred_fallthru
      _
    // Predicated region
    $region10: #{mlp_forward_pallas.1} parent=1 // pred_check
      _
    $region11: #{mlp_forward_pallas.1} parent=1 // pred_check_branch
      %18 = sbr.rel (0) target = $region13
    $region12: #{mlp_forward_pallas.1} parent=1 // pred_region
      _
    $region13: #{mlp_forward_pallas.1} parent=1 // pred_fallthru
      _
    // Predicated region
    $region14: #{mlp_forward_pallas.1} parent=1 // pred_check
      _
    $region15: #{mlp_forward_pallas.1} parent=1 // pred_check_branch
      %20 = sbr.rel (0) target = $region17
    $region16: #{mlp_forward_pallas.1} parent=1 // pred_region
      _
    $region17: #{mlp_forward_pallas.1} parent=1 // pred_fallthru
      _
    // Predicated region
    $region18: #{mlp_forward_pallas.1} parent=1 // pred_check
      _
    $region19: #{mlp_forward_pallas.1} parent=1 // pred_check_branch
      %22 = sbr.rel (0) target = $region21
    $region20: #{mlp_forward_pallas.1} parent=1 // pred_region
      _
    $region21: #{mlp_forward_pallas.1} parent=1 // pred_fallthru
      _
    // Predicated region
    $region22: #{mlp_forward_pallas.1} parent=1 // pred_check
      _
    $region23: #{mlp_forward_pallas.1} parent=1 // pred_check_branch
      %24 = sbr.rel (0) target = $region25
    $region24: #{mlp_forward_pallas.1} parent=1 // pred_region
      %s26 = ssub.s32 1024, 1024
      %27 = vsyncadd [#allocation3], %s26
      %s28 = sshll.u32 [#allocation2], 4
      %s29 = int_to_ptr.vmem [resolvable:$true] %s28
      %34 = dma.hbm_to_vmem [thread:$0]  %s5, 1024, %s29, [#allocation3], 64, 64, 4
    $region25: #{mlp_forward_pallas.1} parent=1 // pred_fallthru
      _
    // Predicated region
    $region26: #{mlp_forward_pallas.1} parent=1 // pred_check
      _
    $region27: #{mlp_forward_pallas.1} parent=1 // pred_check_branch
      %36 = sbr.rel (0) target = $region29
    $region28: #{mlp_forward_pallas.1} parent=1 // pred_region
      _
    $region29: #{mlp_forward_pallas.1} parent=1 // pred_fallthru
      _
    // Predicated region
    $region30: #{mlp_forward_pallas.1} parent=1 // pred_check
      _
    $region31: #{mlp_forward_pallas.1} parent=1 // pred_check_branch
      %38 = sbr.rel (0) target = $region33
    $region32: #{mlp_forward_pallas.1} parent=1 // pred_region
      %39 = dma.done [#allocation3], 1024
    $region33: #{mlp_forward_pallas.1} parent=1 // pred_fallthru
      _
    %v41 = vld [vmem:[%s0] sm:$0xff]
    %v42 = vld [vmem:[%s0 + $0x8] sm:$0xff]
    %v43 = vld [vmem:[%s0 + $0x10] sm:$0xff]
    %v44 = vld [vmem:[%s0 + $0x18] sm:$0xff]
    %v45 = vld [vmem:[%s1] sm:$0xf]
    %v46 = vld [vmem:[%s1 + $0x4] sm:$0xf]
    %v47 = vld [vmem:[%s1 + $0x8] sm:$0xf]
    %v48 = vld [vmem:[%s1 + $0xc] sm:$0xf]
    %v49 = vld [vmem:[%s1 + $0x10] sm:$0xf]
    %v50 = vld [vmem:[%s1 + $0x14] sm:$0xf]
    %v51 = vld [vmem:[%s1 + $0x18] sm:$0xf]
    %v52 = vld [vmem:[%s1 + $0x1c] sm:$0xf]
    %v53 = vld [vmem:[%s1 + $0x20] sm:$0xf]
    %v54 = vld [vmem:[%s1 + $0x24] sm:$0xf]
    %v55 = vld [vmem:[%s1 + $0x28] sm:$0xf]
    %v56 = vld [vmem:[%s1 + $0x2c] sm:$0xf]
    %v57 = vld [vmem:[%s1 + $0x30] sm:$0xf]
    %v58 = vld [vmem:[%s1 + $0x34] sm:$0xf]
    %v59 = vld [vmem:[%s1 + $0x38] sm:$0xf]
    %v60 = vld [vmem:[%s1 + $0x3c] sm:$0xf]
    %v61 = vld [vmem:[%s2] sm:$0x1]
    %v62 = vpack.c.bf16 %v42, %v41
    %v63 = vpack.c.bf16 %v44, %v43
    %v65 = vlaneseq
    %v66 = vshrl.u32 %v65, 7
    %v67 = vsub.s32 0, %v66
    %v68 = vrot.slane %v61, %v67
    %v86 = vunpack.c.l.b16 %v45
    %v87 = vunpack.c.l.b16 %v46
    %v88 = vunpack.c.l.b16 %v47
    %v89 = vunpack.c.l.b16 %v48
    %v90 = vunpack.c.l.b16 %v49
    %v91 = vunpack.c.l.b16 %v50
    %v92 = vunpack.c.l.b16 %v51
    %v93 = vunpack.c.l.b16 %v52
    %v94 = vunpack.c.l.b16 %v53
    %v95 = vunpack.c.l.b16 %v54
    %v96 = vunpack.c.l.b16 %v55
    %v97 = vunpack.c.l.b16 %v56
    %v98 = vunpack.c.l.b16 %v57
    %v99 = vunpack.c.l.b16 %v58
    %v100 = vunpack.c.l.b16 %v59
    %v101 = vunpack.c.l.b16 %v60
    %v102 = vpack.c.b16 %v87, %v86
    %v103 = vpack.c.b16 %v89, %v88
    %v104 = vpack.c.b16 %v91, %v90
    %v105 = vpack.c.b16 %v93, %v92
    %v106 = vpack.c.b16 %v95, %v94
    %v107 = vpack.c.b16 %v97, %v96
    %v108 = vpack.c.b16 %v99, %v98
    %v109 = vpack.c.b16 %v101, %v100
    %118 = vmatprep.subr.bf16.mxu0 0
    %119 = vmatpush1.bf16.msra.mxu0 %v109
    %120 = vmatprep.subr.bf16.mxu0 0
    %121 = vmatpush1.bf16.msra.mxu0 %v108
    %122 = vmatprep.subr.bf16.mxu0 0
    %123 = vmatpush1.bf16.msra.mxu0 %v107
    %124 = vmatprep.subr.bf16.mxu0 0
    %125 = vmatpush1.bf16.msra.mxu0 %v106
    %126 = vmatprep.subr.bf16.mxu0 0
    %127 = vmatpush1.bf16.msra.mxu0 %v105
    %128 = vmatprep.subr.bf16.mxu0 0
    %129 = vmatpush1.bf16.msra.mxu0 %v104
    %130 = vmatprep.subr.bf16.mxu0 0
    %131 = vmatpush1.bf16.msra.mxu0 %v103
    %132 = vmatprep.subr.bf16.mxu0 0
    %133 = vmatpush1.bf16.msra.mxu0 %v102
    %134 = vmatprep.subr.bf16.mxu0 0
    %135 = vmatpush2.bf16.msra.mxu0 0
    %136 = vmatprep.subr.bf16.mxu0 0
    %137 = vmatpush2.bf16.msra.mxu0 0
    %138 = vmatprep.subr.bf16.mxu0 0
    %139 = vmatpush2.bf16.msra.mxu0 0
    %140 = vmatprep.subr.bf16.mxu0 0
    %141 = vmatpush2.bf16.msra.mxu0 0
    %142 = vmatprep.subr.bf16.mxu0 0
    %143 = vmatpush2.bf16.msra.mxu0 0
    %144 = vmatprep.subr.bf16.mxu0 0
    %145 = vmatpush2.bf16.msra.mxu0 0
    %146 = vmatprep.subr.bf16.mxu0 0
    %147 = vmatpush2.bf16.msra.mxu0 0
    %148 = vmatprep.subr.bf16.mxu0 0
    %149 = vmatpush2.bf16.msra.mxu0 0
    %150 = vmatprep.mubr.bf16.mxu0 0
    %151 = vmatmul.mubr.bf16.gmra.mxu0 %v62
    %v152 = vpop.f32.mrf.mxu0
    %v153 = vadd.f32 %v68, %v152
    %v154 = vpop.f32.mrf.mxu0
    %v155 = vpop.f32.mrf.mxu0
    %v156 = vadd.f32 %v68, %v155
    %v157 = vpop.f32.mrf.mxu0
    %158 = vmatprep.mubr.bf16.mxu0 0
    %159 = vmatmul.mubr.bf16.gmra.mxu0 %v63
    %v160 = vpop.f32.mrf.mxu0
    %v161 = vadd.f32 %v68, %v160
    %v162 = vpop.f32.mrf.mxu0
    %v163 = vpop.f32.mrf.mxu0
    %v164 = vadd.f32 %v68, %v163
    %v165 = vpop.f32.mrf.mxu0
    %166 = vdwg.mxu0
    %vm167 = vcmp.gt.f32.partialorder %v153, 0.0
    %vm168 = vcmp.gt.f32.partialorder %v156, 0.0
    %vm169 = vcmp.gt.f32.partialorder %v161, 0.0
    %vm170 = vcmp.gt.f32.partialorder %v164, 0.0
    %v171 = vmin.f32 %v153, 0.0
    %v172 = vmin.f32 %v156, 0.0
    %v173 = vmin.f32 %v161, 0.0
    %v174 = vmin.f32 %v164, 0.0
    %v175 = vmul.f32 %v171, 1.442695
    %v176 = vpow.pop %v175
    %v177 = vmul.f32 %v172, 1.442695
    %v178 = vpow.pop %v177
    %v179 = vmul.f32 %v173, 1.442695
    %v180 = vpow.pop %v179
    %v181 = vmul.f32 %v174, 1.442695
    %v182 = vpow.pop %v181
    %v183 = vsub.f32 %v176, 1.0
    %v184 = vsub.f32 %v178, 1.0
    %v185 = vsub.f32 %v180, 1.0
    %v186 = vsub.f32 %v182, 1.0
    %v187 = vsel %vm167, %v153, %v183
    %v188 = vsel %vm168, %v156, %v184
    %v189 = vsel %vm169, %v161, %v185
    %v190 = vsel %vm170, %v164, %v186
    %v191 = vld [vmem:[%s3] sm:$0xf]
    %v192 = vld [vmem:[%s3 + $0x4] sm:$0xf]
    %v193 = vld [vmem:[%s3 + $0x8] sm:$0xf]
    %v194 = vld [vmem:[%s3 + $0xc] sm:$0xf]
    %v195 = vld [vmem:[%s3 + $0x10] sm:$0xf]
    %v196 = vld [vmem:[%s3 + $0x14] sm:$0xf]
    %v197 = vld [vmem:[%s3 + $0x18] sm:$0xf]
    %v198 = vld [vmem:[%s3 + $0x1c] sm:$0xf]
    %v199 = vld [vmem:[%s3 + $0x20] sm:$0xf]
    %v200 = vld [vmem:[%s3 + $0x24] sm:$0xf]
    %v201 = vld [vmem:[%s3 + $0x28] sm:$0xf]
    %v202 = vld [vmem:[%s3 + $0x2c] sm:$0xf]
    %v203 = vld [vmem:[%s3 + $0x30] sm:$0xf]
    %v204 = vld [vmem:[%s3 + $0x34] sm:$0xf]
    %v205 = vld [vmem:[%s3 + $0x38] sm:$0xf]
    %v206 = vld [vmem:[%s3 + $0x3c] sm:$0xf]
    %v207 = vld [vmem:[%s4] sm:$0x1]
    %v208 = vpack.c.bf16 %v188, %v187
    %v209 = vpack.c.bf16 %v190, %v189
    %v211 = vlaneseq
    %v212 = vshrl.u32 %v211, 7
    %v213 = vsub.s32 0, %v212
    %v214 = vrot.slane %v207, %v213
    %v232 = vunpack.c.l.b16 %v191
    %v233 = vunpack.c.l.b16 %v192
    %v234 = vunpack.c.l.b16 %v193
    %v235 = vunpack.c.l.b16 %v194
    %v236 = vunpack.c.l.b16 %v195
    %v237 = vunpack.c.l.b16 %v196
    %v238 = vunpack.c.l.b16 %v197
    %v239 = vunpack.c.l.b16 %v198
    %v240 = vunpack.c.l.b16 %v199
    %v241 = vunpack.c.l.b16 %v200
    %v242 = vunpack.c.l.b16 %v201
    %v243 = vunpack.c.l.b16 %v202
    %v244 = vunpack.c.l.b16 %v203
    %v245 = vunpack.c.l.b16 %v204
    %v246 = vunpack.c.l.b16 %v205
    %v247 = vunpack.c.l.b16 %v206
    %v248 = vpack.c.b16 %v233, %v232
    %v249 = vpack.c.b16 %v235, %v234
    %v250 = vpack.c.b16 %v237, %v236
    %v251 = vpack.c.b16 %v239, %v238
    %v252 = vpack.c.b16 %v241, %v240
    %v253 = vpack.c.b16 %v243, %v242
    %v254 = vpack.c.b16 %v245, %v244
    %v255 = vpack.c.b16 %v247, %v246
    %264 = vmatprep.subr.bf16.mxu0 0
    %265 = vmatpush1.bf16.msra.mxu0 %v255
    %266 = vmatprep.subr.bf16.mxu0 0
    %267 = vmatpush1.bf16.msra.mxu0 %v254
    %268 = vmatprep.subr.bf16.mxu0 0
    %269 = vmatpush1.bf16.msra.mxu0 %v253
    %270 = vmatprep.subr.bf16.mxu0 0
    %271 = vmatpush1.bf16.msra.mxu0 %v252
    %272 = vmatprep.subr.bf16.mxu0 0
    %273 = vmatpush1.bf16.msra.mxu0 %v251
    %274 = vmatprep.subr.bf16.mxu0 0
    %275 = vmatpush1.bf16.msra.mxu0 %v250
    %276 = vmatprep.subr.bf16.mxu0 0
    %277 = vmatpush1.bf16.msra.mxu0 %v249
    %278 = vmatprep.subr.bf16.mxu0 0
    %279 = vmatpush1.bf16.msra.mxu0 %v248
    %280 = vmatprep.subr.bf16.mxu0 0
    %281 = vmatpush2.bf16.msra.mxu0 0
    %282 = vmatprep.subr.bf16.mxu0 0
    %283 = vmatpush2.bf16.msra.mxu0 0
    %284 = vmatprep.subr.bf16.mxu0 0
    %285 = vmatpush2.bf16.msra.mxu0 0
    %286 = vmatprep.subr.bf16.mxu0 0
    %287 = vmatpush2.bf16.msra.mxu0 0
    %288 = vmatprep.subr.bf16.mxu0 0
    %289 = vmatpush2.bf16.msra.mxu0 0
    %290 = vmatprep.subr.bf16.mxu0 0
    %291 = vmatpush2.bf16.msra.mxu0 0
    %292 = vmatprep.subr.bf16.mxu0 0
    %293 = vmatpush2.bf16.msra.mxu0 0
    %294 = vmatprep.subr.bf16.mxu0 0
    %295 = vmatpush2.bf16.msra.mxu0 0
    %296 = vmatprep.mubr.bf16.mxu0 0
    %297 = vmatmul.mubr.bf16.gmra.mxu0 %v208
    %v298 = vpop.f32.mrf.mxu0
    %v299 = vadd.f32 %v214, %v298
    %v300 = vpop.f32.mrf.mxu0
    %v301 = vpop.f32.mrf.mxu0
    %v302 = vadd.f32 %v214, %v301
    %v303 = vpop.f32.mrf.mxu0
    %304 = vmatprep.mubr.bf16.mxu0 0
    %305 = vmatmul.mubr.bf16.gmra.mxu0 %v209
    %v306 = vpop.f32.mrf.mxu0
    %v307 = vadd.f32 %v214, %v306
    %v308 = vpop.f32.mrf.mxu0
    %v309 = vpop.f32.mrf.mxu0
    %v310 = vadd.f32 %v214, %v309
    %v311 = vpop.f32.mrf.mxu0
    %312 = vdwg.mxu0
    %vm313 = vcmp.gt.f32.partialorder %v299, 0.0
    %vm314 = vcmp.gt.f32.partialorder %v302, 0.0
    %vm315 = vcmp.gt.f32.partialorder %v307, 0.0
    %vm316 = vcmp.gt.f32.partialorder %v310, 0.0
    %v317 = vmin.f32 %v299, 0.0
    %v318 = vmin.f32 %v302, 0.0
    %v319 = vmin.f32 %v307, 0.0
    %v320 = vmin.f32 %v310, 0.0
    %v321 = vmul.f32 %v317, 1.442695
    %v322 = vpow.pop %v321
    %v323 = vmul.f32 %v318, 1.442695
    %v324 = vpow.pop %v323
    %v325 = vmul.f32 %v319, 1.442695
    %v326 = vpow.pop %v325
    %v327 = vmul.f32 %v320, 1.442695
    %v328 = vpow.pop %v327
    %v329 = vsub.f32 %v322, 1.0
    %v330 = vsub.f32 %v324, 1.0
    %v331 = vsub.f32 %v326, 1.0
    %v332 = vsub.f32 %v328, 1.0
    %v333 = vsel %vm313, %v299, %v329
    %v334 = vsel %vm314, %v302, %v330
    %v335 = vsel %vm315, %v307, %v331
    %v336 = vsel %vm316, %v310, %v332
    %v337 = vld [vmem:[#allocation2] sm:$0xf]
    %v338 = vld [vmem:[#allocation2 + $0x4] sm:$0xf]
    %v339 = vld [vmem:[#allocation2 + $0x8] sm:$0xf]
    %v340 = vld [vmem:[#allocation2 + $0xc] sm:$0xf]
    %v341 = vld [vmem:[#allocation2 + $0x10] sm:$0xf]
    %v342 = vld [vmem:[#allocation2 + $0x14] sm:$0xf]
    %v343 = vld [vmem:[#allocation2 + $0x18] sm:$0xf]
    %v344 = vld [vmem:[#allocation2 + $0x1c] sm:$0xf]
    %v345 = vld [vmem:[#allocation2 + $0x20] sm:$0xf]
    %v346 = vld [vmem:[#allocation2 + $0x24] sm:$0xf]
    %v347 = vld [vmem:[#allocation2 + $0x28] sm:$0xf]
    %v348 = vld [vmem:[#allocation2 + $0x2c] sm:$0xf]
    %v349 = vld [vmem:[#allocation2 + $0x30] sm:$0xf]
    %v350 = vld [vmem:[#allocation2 + $0x34] sm:$0xf]
    %v351 = vld [vmem:[#allocation2 + $0x38] sm:$0xf]
    %v352 = vld [vmem:[#allocation2 + $0x3c] sm:$0xf]
    %v353 = vld [vmem:[%s6] sm:$0x1]
    %v354 = vpack.c.bf16 %v334, %v333
    %v355 = vpack.c.bf16 %v336, %v335
    %v357 = vlaneseq
    %v358 = vshrl.u32 %v357, 7
    %v359 = vsub.s32 0, %v358
    %v360 = vrot.slane %v353, %v359
    %v378 = vunpack.c.l.b16 %v337
    %v379 = vunpack.c.l.b16 %v338
    %v380 = vunpack.c.l.b16 %v339
    %v381 = vunpack.c.l.b16 %v340
    %v382 = vunpack.c.l.b16 %v341
    %v383 = vunpack.c.l.b16 %v342
    %v384 = vunpack.c.l.b16 %v343
    %v385 = vunpack.c.l.b16 %v344
    %v386 = vunpack.c.l.b16 %v345
    %v387 = vunpack.c.l.b16 %v346
    %v388 = vunpack.c.l.b16 %v347
    %v389 = vunpack.c.l.b16 %v348
    %v390 = vunpack.c.l.b16 %v349
    %v391 = vunpack.c.l.b16 %v350
    %v392 = vunpack.c.l.b16 %v351
    %v393 = vunpack.c.l.b16 %v352
    %v394 = vpack.c.b16 %v379, %v378
    %v395 = vpack.c.b16 %v381, %v380
    %v396 = vpack.c.b16 %v383, %v382
    %v397 = vpack.c.b16 %v385, %v384
    %v398 = vpack.c.b16 %v387, %v386
    %v399 = vpack.c.b16 %v389, %v388
    %v400 = vpack.c.b16 %v391, %v390
    %v401 = vpack.c.b16 %v393, %v392
    %410 = vmatprep.subr.bf16.mxu0 0
    %411 = vmatpush1.bf16.msra.mxu0 %v401
    %412 = vmatprep.subr.bf16.mxu0 0
    %413 = vmatpush1.bf16.msra.mxu0 %v400
    %414 = vmatprep.subr.bf16.mxu0 0
    %415 = vmatpush1.bf16.msra.mxu0 %v399
    %416 = vmatprep.subr.bf16.mxu0 0
    %417 = vmatpush1.bf16.msra.mxu0 %v398
    %418 = vmatprep.subr.bf16.mxu0 0
    %419 = vmatpush1.bf16.msra.mxu0 %v397
    %420 = vmatprep.subr.bf16.mxu0 0
    %421 = vmatpush1.bf16.msra.mxu0 %v396
    %422 = vmatprep.subr.bf16.mxu0 0
    %423 = vmatpush1.bf16.msra.mxu0 %v395
    %424 = vmatprep.subr.bf16.mxu0 0
    %425 = vmatpush1.bf16.msra.mxu0 %v394
    %426 = vmatprep.subr.bf16.mxu0 0
    %427 = vmatpush2.bf16.msra.mxu0 0
    %428 = vmatprep.subr.bf16.mxu0 0
    %429 = vmatpush2.bf16.msra.mxu0 0
    %430 = vmatprep.subr.bf16.mxu0 0
    %431 = vmatpush2.bf16.msra.mxu0 0
    %432 = vmatprep.subr.bf16.mxu0 0
    %433 = vmatpush2.bf16.msra.mxu0 0
    %434 = vmatprep.subr.bf16.mxu0 0
    %435 = vmatpush2.bf16.msra.mxu0 0
    %436 = vmatprep.subr.bf16.mxu0 0
    %437 = vmatpush2.bf16.msra.mxu0 0
    %438 = vmatprep.subr.bf16.mxu0 0
    %439 = vmatpush2.bf16.msra.mxu0 0
    %440 = vmatprep.subr.bf16.mxu0 0
    %441 = vmatpush2.bf16.msra.mxu0 0
    %442 = vmatprep.mubr.bf16.mxu0 0
    %443 = vmatmul.mubr.bf16.gmra.mxu0 %v354
    %v444 = vpop.f32.mrf.mxu0
    %v445 = vadd.f32 %v360, %v444
    %v446 = vpop.f32.mrf.mxu0
    %v447 = vpop.f32.mrf.mxu0
    %v448 = vadd.f32 %v360, %v447
    %v449 = vpop.f32.mrf.mxu0
    %450 = vmatprep.mubr.bf16.mxu0 0
    %451 = vmatmul.mubr.bf16.gmra.mxu0 %v355
    %v452 = vpop.f32.mrf.mxu0
    %v453 = vadd.f32 %v360, %v452
    %v454 = vpop.f32.mrf.mxu0
    %v455 = vpop.f32.mrf.mxu0
    %v456 = vadd.f32 %v360, %v455
    %v457 = vpop.f32.mrf.mxu0
    %458 = vdwg.mxu0
    %459 = vmax.xlane.f32.xlu0 %v445
    %v460 = vpop.xlane.xlu0 %459
    %461 = vmax.xlane.f32.xlu0 %v448
    %v462 = vpop.xlane.xlu0 %461
    %463 = vmax.xlane.f32.xlu0 %v453
    %v464 = vpop.xlane.xlu0 %463
    %465 = vmax.xlane.f32.xlu0 %v456
    %v466 = vpop.xlane.xlu0 %465
    %v467 = vsub.f32 %v445, %v460
    %v468 = vsub.f32 %v448, %v462
    %v469 = vsub.f32 %v453, %v464
    %v470 = vsub.f32 %v456, %v466
    %v471 = vmul.f32 %v467, 1.442695
    %v472 = vpow.pop %v471
    %v473 = vmul.f32 %v468, 1.442695
    %v474 = vpow.pop %v473
    %v475 = vmul.f32 %v469, 1.442695
    %v476 = vpow.pop %v475
    %v477 = vmul.f32 %v470, 1.442695
    %v478 = vpow.pop %v477
    %479 = vadd.xlane.f32.xlu0 %v472
    %v480 = vpop.xlane.xlu0 %479
    %481 = vadd.xlane.f32.xlu0 %v474
    %v482 = vpop.xlane.xlu0 %481
    %483 = vadd.xlane.f32.xlu0 %v476
    %v484 = vpop.xlane.xlu0 %483
    %485 = vadd.xlane.f32.xlu0 %v478
    %v486 = vpop.xlane.xlu0 %485
    %v487 = vrcp.pop %v480
    %v488 = vrcp.pop %v482
    %v489 = vrcp.pop %v484
    %v490 = vrcp.pop %v486
    %v491 = vmul.f32 %v480, %v487
    %v492 = vmul.f32 %v482, %v488
    %v493 = vmul.f32 %v484, %v489
    %v494 = vmul.f32 %v486, %v490
    %v495 = vsub.f32 2.0, %v491
    %v496 = vsub.f32 2.0, %v492
    %v497 = vsub.f32 2.0, %v493
    %v498 = vsub.f32 2.0, %v494
    %v499 = vmul.f32 %v487, %v495
    %v500 = vmul.f32 %v488, %v496
    %v501 = vmul.f32 %v489, %v497
    %v502 = vmul.f32 %v490, %v498
    %v503 = vmul.f32 %v472, %v499
    %v504 = vmul.f32 %v474, %v500
    %v505 = vmul.f32 %v476, %v501
    %v506 = vmul.f32 %v478, %v502
    %507 = vst [vmem:[%s7] sm:$0xff] %v503
    %508 = vst [vmem:[%s7 + $0x8] sm:$0xff] %v504
    %509 = vst [vmem:[%s7 + $0x10] sm:$0xff] %v505
    %510 = vst [vmem:[%s7 + $0x18] sm:$0xff] %v506
    // Predicated region
    $region34: #{mlp_forward_pallas.1} parent=1 // pred_check
      _
    $region35: #{mlp_forward_pallas.1} parent=1 // pred_check_branch
      %512 = sbr.rel (0) target = $region37
    $region36: #{mlp_forward_pallas.1} parent=1 // pred_region
      _
    $region37: #{mlp_forward_pallas.1} parent=1 // pred_fallthru
      _
    // Predicated region
    $region38: #{mlp_forward_pallas.1} parent=1 // pred_check
      _
    $region39: #{mlp_forward_pallas.1} parent=1 // pred_check_branch
      %514 = sbr.rel (0) target = $region41
    $region40: #{mlp_forward_pallas.1} parent=1 // pred_region
      _
    $region41: #{mlp_forward_pallas.1} parent=1 // pred_fallthru
      _
    %515 = vsyncpa [#allocation3], 1

</llo_original>
